<compile_context>
chip_gen: v5e
topology: v5e:2x2
jax: 0.10.0
libtpu: 0.0.40
codegen_flags: <defaults>
</compile_context>

<pallas_src>
import jax
import jax.numpy as jnp
from jax.experimental import pallas as pl
from jax.experimental.pallas import tpu as pltpu


def _round_up(x, m):
    return ((x + m - 1) // m) * m


def _matmul_bias_kernel(x_ref, w_ref, b_ref, o_ref):
    # x: (TM, K)   w: (K, out)   b: (1, out) f32
    y = jnp.dot(x_ref[...], w_ref[...], preferred_element_type=jnp.float32)
    o_ref[...] = (y + b_ref[...]).astype(o_ref.dtype)


def _two_matmul_bias_kernel(x_ref, w1_ref, w2_ref, b_ref, o_ref):
    # x: (TM, in)   w1: (in, rank)   w2: (rank, out)   b: (1, out) f32
    h = jnp.dot(x_ref[...], w1_ref[...], preferred_element_type=jnp.float32)
    # Cast the intermediate back to the input dtype so bf16 inputs keep the fast MXU
    # path on the second matmul (no-op for f32); accumulation stays f32.
    h = h.astype(x_ref.dtype)
    y = jnp.dot(h, w2_ref[...], preferred_element_type=jnp.float32)
    o_ref[...] = (y + b_ref[...]).astype(o_ref.dtype)


def _pick_tm(M, in_features, out_features, rank_cols, itemsize, tm):
    """Sublane-aligned row tile, clamped to the row count and a VMEM budget."""
    tm = max(8, _round_up(min(tm, _round_up(M, 8)), 8))
    # Per-row working set: double-buffered x/out tiles + f32 intermediate/accumulator.
    per_row = 2 * (in_features + out_features) * itemsize + 4 * (rank_cols + out_features)
    budget = 16 * 1024 * 1024  # leave headroom below the default scoped-VMEM limit
    while tm > 8 and tm * per_row > budget:
        tm = max(8, _round_up(tm // 2, 8))
    return tm


def _tiled_call(kernel, x2d, weight_ops, bias, out_features, rank_cols, tm):
    """Run `kernel` tiled over rows of x2d; weights/bias stay VMEM-resident."""
    M, in_features = x2d.shape

    tm = _pick_tm(M, in_features, out_features, rank_cols, x2d.dtype.itemsize, tm)
    grid_m = pl.cdiv(M, tm)
    m_pad = grid_m * tm
    if m_pad != M:
        x2d = jnp.pad(x2d, ((0, m_pad - M), (0, 0)))

    # Bias pre-cast to f32 in the wrapper (hoisted out of the tiled loop).
    if bias is None:
        b2d = jnp.zeros((1, out_features), jnp.float32)
    else:
        b2d = bias.astype(jnp.float32).reshape(1, out_features)

    # Full-array blocks with constant index_maps -> weights resident across grid steps.
    weight_specs = [pl.BlockSpec(w.shape, lambda i: (0, 0)) for w in weight_ops]

    out = pl.pallas_call(
        kernel,
        out_shape=jax.ShapeDtypeStruct((m_pad, out_features), x2d.dtype),
        grid_spec=pltpu.PrefetchScalarGridSpec(
            num_scalar_prefetch=0,
            grid=(grid_m,),
            in_specs=[pl.BlockSpec((tm, in_features), lambda i: (i, 0))]
            + weight_specs
            + [pl.BlockSpec((1, out_features), lambda i: (0, 0))],
            out_specs=pl.BlockSpec((tm, out_features), lambda i: (i, 0)),
        ),
        compiler_params=pltpu.CompilerParams(
            dimension_semantics=("parallel",),
        ),
    )(x2d, *weight_ops, b2d)

    return out[:M] if m_pad != M else out


def low_rank_linear(x, w1, w2, bias, *, fuse_weights=None, tm=512):
    """Low-rank branch: y = (x @ w1.T) @ w2.T + bias.

    w1: (rank, in_features)   first Linear weight (bias=False)
    w2: (out_features, rank)  second Linear weight
    bias: (out_features,) or None
    """
    orig_shape = x.shape
    in_features = orig_shape[-1]
    rank = w1.shape[0]
    out_features = w2.shape[0]
    x2d = x.reshape(-1, in_features)

    if fuse_weights is None:
        # rank < 128 underfills the MXU contraction dim on the second matmul:
        # fold both (static) weights into one (in, out) matrix in the wrapper.
        fuse_weights = rank < 128

    if fuse_weights:
        w_eff = jnp.dot(
            w1.T.astype(jnp.float32), w2.T.astype(jnp.float32)
        ).astype(x.dtype)  # (in, out)
        out = _tiled_call(_matmul_bias_kernel, x2d, [w_eff], bias, out_features, 0, tm)
    else:
        w1_t = w1.T  # (in, rank)
        w2_t = w2.T  # (rank, out)
        out = _tiled_call(
            _two_matmul_bias_kernel, x2d, [w1_t, w2_t], bias, out_features, rank, tm
        )

    return out.reshape(*orig_shape[:-1], out_features)


def standard_linear(x, w, bias, *, tm=512):
    """Fallback branch of LowRankLinear (features not divisible by rank_factor)."""
    orig_shape = x.shape
    in_features = orig_shape[-1]
    out_features = w.shape[0]
    x2d = x.reshape(-1, in_features)
    out = _tiled_call(_matmul_bias_kernel, x2d, [w.T], bias, out_features, 0, tm)
    return out.reshape(*orig_shape[:-1], out_features)


if __name__ == "__main__":
    key = jax.random.PRNGKey(0)
    keys = jax.random.split(key, 8)

    # ---- Low-rank branch: in=32, out=32, rank_factor=4 -> rank=8 ----
    in_features, out_features, rank_factor = 32, 32, 4
    rank = in_features // rank_factor

    x = jax.random.normal(keys[0], (2, 8, in_features), dtype=jnp.float32)

    bound1 = 1.0 / (in_features ** 0.5)
    bound2 = 1.0 / (rank ** 0.5)
    w1 = jax.random.uniform(keys[1], (rank, in_features), minval=-bound1,
                            maxval=bound1, dtype=jnp.float32)
    w2 = jax.random.uniform(keys[2], (out_features, rank), minval=-bound2,
                            maxval=bound2, dtype=jnp.float32)
    b = jax.random.uniform(keys[3], (out_features,), minval=-bound2,
                           maxval=bound2, dtype=jnp.float32)

    y_ref = (x @ w1.T) @ w2.T + b

    # Fused-weight path (default for small rank).
    y_fused = low_rank_linear(x, w1, w2, b)
    jax.block_until_ready(y_fused)
    assert y_fused.shape == (2, 8, out_features)
    assert jnp.allclose(y_fused, y_ref, atol=1e-4, rtol=1e-4)

    # In-kernel two-matmul path (used when rank is large enough to fill the MXU).
    y_two = low_rank_linear(x, w1, w2, b, fuse_weights=False)
    jax.block_until_ready(y_two)
    assert jnp.allclose(y_two, y_ref, atol=1e-5, rtol=1e-5)

    # M-tiling / padding path: M = 150 rows, TM = 64 -> grid of 3 with row padding.
    x_big = jax.random.normal(keys[4], (3, 50, in_features), dtype=jnp.float32)
    y_big = low_rank_linear(x_big, w1, w2, b, tm=64)
    jax.block_until_ready(y_big)
    y_big_ref = (x_big @ w1.T) @ w2.T + b
    assert jnp.allclose(y_big, y_big_ref, atol=1e-4, rtol=1e-4)

    # ---- Fallback branch: out not divisible by rank_factor -> plain Linear ----
    out_f2 = 30
    bound = 1.0 / (in_features ** 0.5)
    w_full = jax.random.uniform(keys[5], (out_f2, in_features), minval=-bound,
                                maxval=bound, dtype=jnp.float32)
    b_full = jax.random.uniform(keys[6], (out_f2,), minval=-bound,
                                maxval=bound, dtype=jnp.float32)
    y_fb = standard_linear(x, w_full, b_full)
    jax.block_until_ready(y_fb)
    y_fb_ref = x @ w_full.T + b_full
    assert jnp.allclose(y_fb, y_fb_ref, atol=1e-5, rtol=1e-5)

    # bias=False variant of the fallback branch.
    y_nb = standard_linear(x, w_full, None)
    jax.block_until_ready(y_nb)
    assert jnp.allclose(y_nb, x @ w_full.T, atol=1e-5, rtol=1e-5)

    print("KERNEL_OK")
</pallas_src>

<mosaic_0001>
module attributes {stable_mosaic.version = 11 : i64} {
  func.func @_matmul_bias_kernel(%arg0: i32, %arg1: memref<16x32xf32, #tpu.memory_space<vmem>>, %arg2: memref<32x32xf32, #tpu.memory_space<vmem>>, %arg3: memref<1x32xf32, #tpu.memory_space<vmem>>, %arg4: memref<16x32xf32, #tpu.memory_space<vmem>>) attributes {dimension_semantics = [#tpu.dimension_semantics<parallel>], iteration_bounds = array<i64: 1>, scalar_prefetch = 0 : i64, scratch_operands = 0 : i64, tpu.core_type = #tpu.core_type<tc>, window_params = [{transform_indices = @transform_0, window_bounds = array<i64: 16, 32>}, {pipeline_mode = #tpu.pipeline_mode<synchronous>, transform_indices = @transform_1, window_bounds = array<i64: 32, 32>}, {pipeline_mode = #tpu.pipeline_mode<synchronous>, transform_indices = @transform_2, window_bounds = array<i64: 1, 32>}, {transform_indices = @transform_3, window_bounds = array<i64: 16, 32>}]} {
    %c0 = arith.constant 0 : index
    %c0_0 = arith.constant 0 : index
    %0 = vector.load %arg1[%c0, %c0_0] : memref<16x32xf32, #tpu.memory_space<vmem>>, vector<16x32xf32>
    %c0_1 = arith.constant 0 : index
    %c0_2 = arith.constant 0 : index
    %1 = vector.load %arg2[%c0_1, %c0_2] : memref<32x32xf32, #tpu.memory_space<vmem>>, vector<32x32xf32>
    %cst = arith.constant dense<0.000000e+00> : vector<16x32xf32>
    %2 = tpu.matmul %0, %1, %cst {dimension_numbers = #tpu.dot_dimension_numbers<[1], [0], [0], [1], [0, 0, 1, 1], [], []>} : vector<16x32xf32>, vector<32x32xf32>, vector<16x32xf32> -> vector<16x32xf32>
    %c0_3 = arith.constant 0 : index
    %c0_4 = arith.constant 0 : index
    %3 = vector.load %arg3[%c0_3, %c0_4] : memref<1x32xf32, #tpu.memory_space<vmem>>, vector<1x32xf32>
    %4 = vector.broadcast %3 : vector<1x32xf32> to vector<16x32xf32>
    %5 = arith.addf %2, %4 : vector<16x32xf32>
    %c0_5 = arith.constant 0 : index
    %c0_6 = arith.constant 0 : index
    %6 = vector.load %arg4[%c0_5, %c0_6] : memref<16x32xf32, #tpu.memory_space<vmem>>, vector<16x32xf32>
    tpu.vector_store %arg4[%c0_5, %c0_6], %5 {strides = array<i32>} : memref<16x32xf32, #tpu.memory_space<vmem>>, vector<16x32xf32>,
    return
  }
  func.func @transform_0(%arg0: i32) -> (i32, i32) {
    %c0_i32 = arith.constant 0 : i32
    %c0_i32_0 = arith.constant 0 : i32
    return %arg0, %c0_i32 : i32, i32
  }
  func.func @transform_1(%arg0: i32) -> (i32, i32) {
    %c0_i32 = arith.constant 0 : i32
    %c0_i32_0 = arith.constant 0 : i32
    %c0_i32_1 = arith.constant 0 : i32
    return %c0_i32, %c0_i32_0 : i32, i32
  }
  func.func @transform_2(%arg0: i32) -> (i32, i32) {
    %c0_i32 = arith.constant 0 : i32
    %c0_i32_0 = arith.constant 0 : i32
    %c0_i32_1 = arith.constant 0 : i32
    return %c0_i32, %c0_i32_0 : i32, i32
  }
  func.func @transform_3(%arg0: i32) -> (i32, i32) {
    %c0_i32 = arith.constant 0 : i32
    %c0_i32_0 = arith.constant 0 : i32
    return %arg0, %c0_i32 : i32, i32
  }
}

</mosaic_0001>

<llo_original>
// kernel: tpu_custom_call.1
$region0: #{tpu_custom_call.1}
  #allocation0 [shape = 'u32[]', space=smem, size = 0x4, offset = 0x4, fixed_abs, tag = 'smem constant byte address 0x4 - core index']
  #allocation1 [shape = 'u32[72,128]{1,0:T(1,128)}', space=vmem, size = 0x9000, scoped, tag = 'internal scratch']
  %s0 = inlined_call_operand.hbm [shape: f32[16,32], index: 0, kind: input, shape index: {}]
  %s1 = inlined_call_operand.hbm [shape: f32[32,32], index: 1, kind: input, shape index: {}]
  %s2 = inlined_call_operand.vmem [shape: f32[1,32], index: 2, kind: input, shape index: {}]
  %s3 = inlined_call_operand.hbm [shape: f32[16,32], index: 3, kind: output, shape index: {}]
  %s4 = sld [smem:[#allocation0]]
  $region30: #{tpu_custom_call.1} parent=0
    _
  %s6 = ssub.s32 1, %s4
  %s7 = scalar_select 0, %s6, %s4
  $region1: #{tpu_custom_call.1} parent=0
    #allocation2 [shape = 'u8[8192]{0}', space=vmem, size = 0x2000, scoped, tag = 'input window, operand 0, single buffered']
    #allocation3 [shape = 's32[1]{0}', space=sflag, size = 0x4, scoped, tag = 'scoped memory for tpu_custom_call.1']
    #allocation4 [shape = 's32[1]{0}', space=sflag, size = 0x4, scoped, tag = 'scoped memory for tpu_custom_call.1']
    #allocation5 [shape = 'u8[16384]{0}', space=vmem, size = 0x4000, scoped, tag = 'input window, operand 1, single buffered']
    #allocation6 [shape = 's32[1]{0}', space=sflag, size = 0x4, scoped, tag = 'scoped memory for tpu_custom_call.1']
    #allocation7 [shape = 'u8[8192]{0}', space=vmem, size = 0x2000, scoped, tag = 'output window, operand 0, single buffered']
    %8 = vsyncpa [#allocation3], 0
    %9 = vsyncpa [#allocation6], 0
    %10 = vsyncpa [#allocation4], 0
    // Predicated region
    $region2: #{tpu_custom_call.1} parent=1 // pred_check
      _
    $region3: #{tpu_custom_call.1} parent=1 // pred_check_branch
      %12 = sbr.rel (0) target = $region5
    $region4: #{tpu_custom_call.1} parent=1 // pred_region
      %14 = vsyncadd [#allocation3], 0
      %s15 = sshll.u32 %s0, 4
      %s16 = int_to_ptr.hbm [resolvable:$true] %s15
      %s17 = sshll.u32 [#allocation2], 4
      %s18 = int_to_ptr.vmem [resolvable:$true] %s17
      %23 = dma.hbm_to_vmem [thread:$0]  %s16, 256, %s18, [#allocation3], 128, 128, 8
    $region5: #{tpu_custom_call.1} parent=1 // pred_fallthru
      _
    // Predicated region
    $region6: #{tpu_custom_call.1} parent=1 // pred_check
      _
    $region7: #{tpu_custom_call.1} parent=1 // pred_check_branch
      %25 = sbr.rel (0) target = $region9
    $region8: #{tpu_custom_call.1} parent=1 // pred_region
      %27 = vsyncadd [#allocation6], 0
      %s28 = sshll.u32 %s1, 4
      %s29 = int_to_ptr.hbm [resolvable:$true] %s28
      %s30 = sshll.u32 [#allocation5], 4
      %s31 = int_to_ptr.vmem [resolvable:$true] %s30
      %36 = dma.hbm_to_vmem [thread:$0]  %s29, 512, %s31, [#allocation6], 128, 128, 8
    $region9: #{tpu_custom_call.1} parent=1 // pred_fallthru
      _
    // Predicated region
    $region10: #{tpu_custom_call.1} parent=1 // pred_check
      _
    $region11: #{tpu_custom_call.1} parent=1 // pred_check_branch
      %38 = sbr.rel (0) target = $region13
    $region12: #{tpu_custom_call.1} parent=1 // pred_region
      _
    $region13: #{tpu_custom_call.1} parent=1 // pred_fallthru
      _
    // Predicated region
    $region14: #{tpu_custom_call.1} parent=1 // pred_check
      _
    $region15: #{tpu_custom_call.1} parent=1 // pred_check_branch
      %40 = sbr.rel (0) target = $region17
    $region16: #{tpu_custom_call.1} parent=1 // pred_region
      %42 = dma.done [#allocation3], 256
    $region17: #{tpu_custom_call.1} parent=1 // pred_fallthru
      _
    // Predicated region
    $region18: #{tpu_custom_call.1} parent=1 // pred_check
      _
    $region19: #{tpu_custom_call.1} parent=1 // pred_check_branch
      %44 = sbr.rel (0) target = $region21
    $region20: #{tpu_custom_call.1} parent=1 // pred_region
      %46 = dma.done [#allocation6], 512
    $region21: #{tpu_custom_call.1} parent=1 // pred_fallthru
      _
    %v47 = vld [vmem:[#allocation2] sm:$0xff]
    %v48 = vld [vmem:[#allocation2 + $0x8] sm:$0xff]
    %v49 = vld [vmem:[#allocation5] sm:$0xff]
    %v50 = vld [vmem:[#allocation5 + $0x8] sm:$0xff]
    %v51 = vld [vmem:[#allocation5 + $0x10] sm:$0xff]
    %v52 = vld [vmem:[#allocation5 + $0x18] sm:$0xff]
    %v53 = vld [vmem:[%s2] sm:$0x1]
    %v55 = vperm.slane %v53, 0
    %vm57 = vcmask 261120
    %v59 = vsel %vm57, %v47, 0
    %v62 = vsel %vm57, %v48, 0
    %64 = vmatpush.msra.mxu0 0.0
    %65 = vmatpush.msra.mxu0 0.0
    %66 = vmatpush.msra.mxu0 0.0
    %67 = vmatpush.msra.mxu0 0.0
    %68 = vmatpush.msra.mxu0 0.0
    %69 = vmatpush.msra.mxu0 0.0
    %70 = vmatpush.msra.mxu0 0.0
    %71 = vmatpush.msra.mxu0 0.0
    %72 = vmatpush.msra.mxu0 0.0
    %73 = vmatpush.msra.mxu0 0.0
    %74 = vmatpush.msra.mxu0 0.0
    %75 = vmatpush.msra.mxu0 0.0
    %76 = vmatpush.msra.mxu0 %v52
    %77 = vmatpush.msra.mxu0 %v51
    %78 = vmatpush.msra.mxu0 %v50
    %79 = vmatpush.msra.mxu0 %v49
    %80 = vmatmul.f32.gmra.mxu0 %v59
    %v81 = vpop.f32.mrf.mxu0
    %v82 = vadd.f32 %v55, %v81
    %83 = vmatmul.f32.gmra.mxu0 %v62
    %v84 = vpop.f32.mrf.mxu0
    %v85 = vadd.f32 %v55, %v84
    %86 = vdwg.mxu0
    %87 = vst.msk [vmem:[#allocation7] sm:$0xff] %vm57, %v82
    %88 = vst.msk [vmem:[#allocation7 + $0x8] sm:$0xff] %vm57, %v85
    // Predicated region
    $region22: #{tpu_custom_call.1} parent=1 // pred_check
      _
    $region23: #{tpu_custom_call.1} parent=1 // pred_check_branch
      %90 = sbr.rel (0) target = $region25
    $region24: #{tpu_custom_call.1} parent=1 // pred_region
      %92 = vsyncadd [#allocation4], 0
      %s93 = sshll.u32 [#allocation7], 4
      %s94 = int_to_ptr.vmem [resolvable:$true] %s93
      %s95 = sshll.u32 %s3, 4
      %s96 = int_to_ptr.hbm [resolvable:$true] %s95
      %101 = dma.vmem_to_hbm [thread:$0]  %s94, 256, %s96, [#allocation4], 128, 128, 8
    $region25: #{tpu_custom_call.1} parent=1 // pred_fallthru
      _
    // Predicated region
    $region26: #{tpu_custom_call.1} parent=1 // pred_check
      _
    $region27: #{tpu_custom_call.1} parent=1 // pred_check_branch
      %103 = sbr.rel (0) target = $region29
    $region28: #{tpu_custom_call.1} parent=1 // pred_region
      %105 = dma.done [#allocation4], 256
    $region29: #{tpu_custom_call.1} parent=1 // pred_fallthru
      _
    %106 = vsyncpa [#allocation3], 1
    %107 = vsyncpa [#allocation6], 1
    %108 = vsyncpa [#allocation4], 1

</llo_original>
